<compile_context>
chip_gen: v5e
topology: v5e:2x2
jax: 0.10.0
libtpu: 0.0.40
codegen_flags: <defaults>
</compile_context>

<pallas_src>
import jax
import jax.numpy as jnp
from jax.experimental import pallas as pl
from jax.experimental.pallas import tpu as pltpu

LEAKY_SLOPE = 0.2
BN_EPS = 1e-5


# ----------------------------- Pallas kernel ------------------------------ #

def _discr_fused_kernel(x_ref,
                        w1_ref, s1_ref, w2_ref, s2_ref,
                        w3_ref, s3_ref, w4_ref, s4_ref,
                        o_ref):
    """One batch-tile of the full 4-layer discriminator."""

    def layer(h, w_ref, shift_ref, act):
        # bf16 operands, f32 accumulation on the MXU.
        y = jnp.dot(h, w_ref[...], preferred_element_type=jnp.float32)
        y = y + shift_ref[...]                      # (1, N) f32 broadcast
        if act == "leaky_relu":
            y = jnp.where(y >= 0.0, y, LEAKY_SLOPE * y)
        elif act == "tanh":
            y = jnp.tanh(y)                         # EUP
        return y

    h = x_ref[...]                                  # (tm, p_dim) bf16
    h = layer(h, w1_ref, s1_ref, "leaky_relu").astype(jnp.bfloat16)
    h = layer(h, w2_ref, s2_ref, "leaky_relu").astype(jnp.bfloat16)
    h = layer(h, w3_ref, s3_ref, "leaky_relu").astype(jnp.bfloat16)
    y = layer(h, w4_ref, s4_ref, "tanh")
    o_ref[...] = y.astype(o_ref.dtype)


# ----------------------------- wrapper (JAX) ------------------------------- #

def _round_up(x, m):
    return pl.cdiv(x, m) * m


def _fold_unit(p):
    """Fold Linear bias + eval-mode BN into (bf16 weight (in,out), f32 shift)."""
    s = p["gamma"] / jnp.sqrt(p["var"] + BN_EPS)
    w_f = (p["W"].T * s[None, :]).astype(jnp.bfloat16)          # (in, out)
    shift = ((p["b"] - p["mean"]) * s + p["beta"]).astype(jnp.float32)
    return w_f, shift.reshape(1, -1)


def discr_forward(params, x, *, tm=256):
    M, K = x.shape
    tm = min(tm, _round_up(M, 8))          # multiple-of-8 sublane tile
    M_pad = _round_up(M, tm)
    xp = x if M_pad == M else jnp.pad(x, ((0, M_pad - M), (0, 0)))
    xp = xp.astype(jnp.bfloat16)

    args = [xp]
    in_specs = [pl.BlockSpec((tm, K), lambda i: (i, 0))]
    for name in ("fc_1", "fc_2", "fc_3", "fc_4"):
        w_f, shift = _fold_unit(params[name])
        args += [w_f, shift]
        # Constant index_maps: weights / shifts fetched once, VMEM-resident.
        in_specs += [pl.BlockSpec(w_f.shape, lambda i: (0, 0)),
                     pl.BlockSpec(shift.shape, lambda i: (0, 0))]

    n_out = params["fc_4"]["W"].shape[0]   # = 1
    out = pl.pallas_call(
        _discr_fused_kernel,
        out_shape=jax.ShapeDtypeStruct((M_pad, n_out), jnp.float32),
        grid_spec=pltpu.PrefetchScalarGridSpec(
            num_scalar_prefetch=0,
            grid=(M_pad // tm,),
            in_specs=in_specs,
            out_specs=pl.BlockSpec((tm, n_out), lambda i: (i, 0)),
        ),
        compiler_params=pltpu.CompilerParams(
            dimension_semantics=("parallel",),       # megacore-shard the batch
            vmem_limit_bytes=32 * 1024 * 1024),
    )(*args)
    return out[:M]


# ------------------------------- params ------------------------------------ #

def _init_linear_unit(key, fan_in, fan_out):
    kw, kb, kg, kbe, km, kv = jax.random.split(key, 6)
    bound = 1.0 / (fan_in ** 0.5)
    return {
        "W": jax.random.uniform(kw, (fan_out, fan_in), jnp.float32, -bound, bound),
        "b": jax.random.uniform(kb, (fan_out,), jnp.float32, -bound, bound),
        "gamma": jax.random.uniform(kg, (fan_out,), jnp.float32, 0.5, 1.5),
        "beta": 0.1 * jax.random.normal(kbe, (fan_out,), jnp.float32),
        "mean": 0.1 * jax.random.normal(km, (fan_out,), jnp.float32),
        "var": jax.random.uniform(kv, (fan_out,), jnp.float32, 0.5, 1.5),
    }


def init_discr_params(key, p_dim, p0_dim):
    ks = jax.random.split(key, 4)
    return {
        "fc_1": _init_linear_unit(ks[0], p_dim, p0_dim),
        "fc_2": _init_linear_unit(ks[1], p0_dim, p0_dim // 2),
        "fc_3": _init_linear_unit(ks[2], p0_dim // 2, p0_dim // 4),
        "fc_4": _init_linear_unit(ks[3], p0_dim // 4, 1),
    }


# --------------------------- pure-JAX reference ----------------------------- #

def _act(y, act):
    if act == "leaky_relu":
        return jnp.where(y >= 0.0, y, LEAKY_SLOPE * y)
    if act == "tanh":
        return jnp.tanh(y)
    return y


def _linear_unit_ref(x, p, act):
    y = x @ p["W"].T + p["b"][None, :]
    y = (y - p["mean"][None, :]) / jnp.sqrt(p["var"][None, :] + BN_EPS)
    y = y * p["gamma"][None, :] + p["beta"][None, :]
    return _act(y, act)


def discr_reference(params, x):
    h = _linear_unit_ref(x, params["fc_1"], "leaky_relu")
    h = _linear_unit_ref(h, params["fc_2"], "leaky_relu")
    h = _linear_unit_ref(h, params["fc_3"], "leaky_relu")
    return _linear_unit_ref(h, params["fc_4"], "tanh")


# --------------------------------- main ------------------------------------ #

if __name__ == "__main__":
    # Small config consistent with Discr_Network's constructor arguments.
    B, P_DIM, P0_DIM = 2, 32, 32

    key = jax.random.PRNGKey(0)
    kp, kx = jax.random.split(key)
    params = init_discr_params(kp, P_DIM, P0_DIM)
    x = jax.random.normal(kx, (B, P_DIM), jnp.float32)

    out = jax.block_until_ready(discr_forward(params, x))
    assert out.shape == (B, 1), out.shape

    ref = jax.block_until_ready(discr_reference(params, x))
    max_err = float(jnp.max(jnp.abs(out - ref)))
    # bf16 MXU operands with f32 accumulation / f32 epilogue: loose-ish tol.
    if not jnp.allclose(out, ref, atol=2e-2, rtol=2e-2):
        raise AssertionError(f"mismatch vs reference, max abs err {max_err}")

    print("KERNEL_OK")
</pallas_src>

<mosaic_0001>
module attributes {stable_mosaic.version = 11 : i64} {
  func.func @_discr_fused_kernel(%arg0: i32, %arg1: memref<8x32xbf16, #tpu.memory_space<vmem>>, %arg2: memref<32x32xbf16, #tpu.memory_space<vmem>>, %arg3: memref<1x32xf32, #tpu.memory_space<vmem>>, %arg4: memref<32x16xbf16, #tpu.memory_space<vmem>>, %arg5: memref<1x16xf32, #tpu.memory_space<vmem>>, %arg6: memref<16x8xbf16, #tpu.memory_space<vmem>>, %arg7: memref<1x8xf32, #tpu.memory_space<vmem>>, %arg8: memref<8x1xbf16, #tpu.memory_space<vmem>>, %arg9: memref<1x1xf32, #tpu.memory_space<vmem>>, %arg10: memref<8x1xf32, #tpu.memory_space<vmem>>) attributes {dimension_semantics = [#tpu.dimension_semantics<parallel>], iteration_bounds = array<i64: 1>, scalar_prefetch = 0 : i64, scratch_operands = 0 : i64, tpu.core_type = #tpu.core_type<tc>, window_params = [{transform_indices = @transform_0, window_bounds = array<i64: 8, 32>}, {pipeline_mode = #tpu.pipeline_mode<synchronous>, transform_indices = @transform_1, window_bounds = array<i64: 32, 32>}, {pipeline_mode = #tpu.pipeline_mode<synchronous>, transform_indices = @transform_2, window_bounds = array<i64: 1, 32>}, {pipeline_mode = #tpu.pipeline_mode<synchronous>, transform_indices = @transform_3, window_bounds = array<i64: 32, 16>}, {pipeline_mode = #tpu.pipeline_mode<synchronous>, transform_indices = @transform_4, window_bounds = array<i64: 1, 16>}, {pipeline_mode = #tpu.pipeline_mode<synchronous>, transform_indices = @transform_5, window_bounds = array<i64: 16, 8>}, {pipeline_mode = #tpu.pipeline_mode<synchronous>, transform_indices = @transform_6, window_bounds = array<i64: 1, 8>}, {pipeline_mode = #tpu.pipeline_mode<synchronous>, transform_indices = @transform_7, window_bounds = array<i64: 8, 1>}, {pipeline_mode = #tpu.pipeline_mode<synchronous>, transform_indices = @transform_8, window_bounds = array<i64: 1, 1>}, {transform_indices = @transform_9, window_bounds = array<i64: 8, 1>}]} {
    %c0 = arith.constant 0 : index
    %c0_0 = arith.constant 0 : index
    %0 = vector.load %arg1[%c0, %c0_0] : memref<8x32xbf16, #tpu.memory_space<vmem>>, vector<8x32xbf16>
    %c0_1 = arith.constant 0 : index
    %c0_2 = arith.constant 0 : index
    %1 = vector.load %arg2[%c0_1, %c0_2] : memref<32x32xbf16, #tpu.memory_space<vmem>>, vector<32x32xbf16>
    %cst = arith.constant dense<0.000000e+00> : vector<8x32xf32>
    %2 = tpu.matmul %0, %1, %cst {dimension_numbers = #tpu.dot_dimension_numbers<[1], [0], [0], [1], [0, 0, 1, 1], [], []>} : vector<8x32xbf16>, vector<32x32xbf16>, vector<8x32xf32> -> vector<8x32xf32>
    %c0_3 = arith.constant 0 : index
    %c0_4 = arith.constant 0 : index
    %3 = vector.load %arg3[%c0_3, %c0_4] : memref<1x32xf32, #tpu.memory_space<vmem>>, vector<1x32xf32>
    %4 = vector.broadcast %3 : vector<1x32xf32> to vector<8x32xf32>
    %5 = arith.addf %2, %4 : vector<8x32xf32>
    %cst_5 = arith.constant 0.000000e+00 : f32
    %6 = vector.broadcast %cst_5 : f32 to vector<8x32xf32>
    %7 = arith.cmpf oge, %5, %6 : vector<8x32xf32>
    %cst_6 = arith.constant 2.000000e-01 : f32
    %8 = vector.broadcast %cst_6 : f32 to vector<8x32xf32>
    %9 = arith.mulf %8, %5 : vector<8x32xf32>
    %10 = arith.select %7, %5, %9 : vector<8x32xi1>, vector<8x32xf32>
    %11 = arith.truncf %10 : vector<8x32xf32> to vector<8x32xbf16>
    %c0_7 = arith.constant 0 : index
    %c0_8 = arith.constant 0 : index
    %12 = vector.load %arg4[%c0_7, %c0_8] : memref<32x16xbf16, #tpu.memory_space<vmem>>, vector<32x16xbf16>
    %cst_9 = arith.constant dense<0.000000e+00> : vector<8x16xf32>
    %13 = tpu.matmul %11, %12, %cst_9 {dimension_numbers = #tpu.dot_dimension_numbers<[1], [0], [0], [1], [0, 0, 1, 1], [], []>} : vector<8x32xbf16>, vector<32x16xbf16>, vector<8x16xf32> -> vector<8x16xf32>
    %c0_10 = arith.constant 0 : index
    %c0_11 = arith.constant 0 : index
    %14 = vector.load %arg5[%c0_10, %c0_11] : memref<1x16xf32, #tpu.memory_space<vmem>>, vector<1x16xf32>
    %15 = vector.broadcast %14 : vector<1x16xf32> to vector<8x16xf32>
    %16 = arith.addf %13, %15 : vector<8x16xf32>
    %cst_12 = arith.constant 0.000000e+00 : f32
    %17 = vector.broadcast %cst_12 : f32 to vector<8x16xf32>
    %18 = arith.cmpf oge, %16, %17 : vector<8x16xf32>
    %cst_13 = arith.constant 2.000000e-01 : f32
    %19 = vector.broadcast %cst_13 : f32 to vector<8x16xf32>
    %20 = arith.mulf %19, %16 : vector<8x16xf32>
    %21 = arith.select %18, %16, %20 : vector<8x16xi1>, vector<8x16xf32>
    %22 = arith.truncf %21 : vector<8x16xf32> to vector<8x16xbf16>
    %c0_14 = arith.constant 0 : index
    %c0_15 = arith.constant 0 : index
    %23 = vector.load %arg6[%c0_14, %c0_15] : memref<16x8xbf16, #tpu.memory_space<vmem>>, vector<16x8xbf16>
    %cst_16 = arith.constant dense<0.000000e+00> : vector<8x8xf32>
    %24 = tpu.matmul %22, %23, %cst_16 {dimension_numbers = #tpu.dot_dimension_numbers<[1], [0], [0], [1], [0, 0, 1, 1], [], []>} : vector<8x16xbf16>, vector<16x8xbf16>, vector<8x8xf32> -> vector<8x8xf32>
    %c0_17 = arith.constant 0 : index
    %c0_18 = arith.constant 0 : index
    %25 = vector.load %arg7[%c0_17, %c0_18] : memref<1x8xf32, #tpu.memory_space<vmem>>, vector<1x8xf32>
    %26 = vector.broadcast %25 : vector<1x8xf32> to vector<8x8xf32>
    %27 = arith.addf %24, %26 : vector<8x8xf32>
    %cst_19 = arith.constant 0.000000e+00 : f32
    %28 = vector.broadcast %cst_19 : f32 to vector<8x8xf32>
    %29 = arith.cmpf oge, %27, %28 : vector<8x8xf32>
    %cst_20 = arith.constant 2.000000e-01 : f32
    %30 = vector.broadcast %cst_20 : f32 to vector<8x8xf32>
    %31 = arith.mulf %30, %27 : vector<8x8xf32>
    %32 = arith.select %29, %27, %31 : vector<8x8xi1>, vector<8x8xf32>
    %33 = arith.truncf %32 : vector<8x8xf32> to vector<8x8xbf16>
    %c0_21 = arith.constant 0 : index
    %c0_22 = arith.constant 0 : index
    %34 = vector.load %arg8[%c0_21, %c0_22] : memref<8x1xbf16, #tpu.memory_space<vmem>>, vector<8x1xbf16>
    %cst_23 = arith.constant dense<0.000000e+00> : vector<8x1xf32>
    %35 = tpu.matmul %33, %34, %cst_23 {dimension_numbers = #tpu.dot_dimension_numbers<[1], [0], [0], [1], [0, 0, 1, 1], [], []>} : vector<8x8xbf16>, vector<8x1xbf16>, vector<8x1xf32> -> vector<8x1xf32>
    %c0_24 = arith.constant 0 : index
    %c0_25 = arith.constant 0 : index
    %36 = vector.load %arg9[%c0_24, %c0_25] : memref<1x1xf32, #tpu.memory_space<vmem>>, vector<1x1xf32>
    %37 = vector.broadcast %36 : vector<1x1xf32> to vector<8x1xf32>
    %38 = arith.addf %35, %37 : vector<8x1xf32>
    %39 = math.tanh %38 : vector<8x1xf32>
    %c0_26 = arith.constant 0 : index
    %c0_27 = arith.constant 0 : index
    %40 = vector.load %arg10[%c0_26, %c0_27] : memref<8x1xf32, #tpu.memory_space<vmem>>, vector<8x1xf32>
    tpu.vector_store %arg10[%c0_26, %c0_27], %39 {strides = array<i32>} : memref<8x1xf32, #tpu.memory_space<vmem>>, vector<8x1xf32>,
    return
  }
  func.func @transform_0(%arg0: i32) -> (i32, i32) {
    %c0_i32 = arith.constant 0 : i32
    %c0_i32_0 = arith.constant 0 : i32
    return %arg0, %c0_i32 : i32, i32
  }
  func.func @transform_1(%arg0: i32) -> (i32, i32) {
    %c0_i32 = arith.constant 0 : i32
    %c0_i32_0 = arith.constant 0 : i32
    %c0_i32_1 = arith.constant 0 : i32
    return %c0_i32, %c0_i32_0 : i32, i32
  }
  func.func @transform_2(%arg0: i32) -> (i32, i32) {
    %c0_i32 = arith.constant 0 : i32
    %c0_i32_0 = arith.constant 0 : i32
    %c0_i32_1 = arith.constant 0 : i32
    return %c0_i32, %c0_i32_0 : i32, i32
  }
  func.func @transform_3(%arg0: i32) -> (i32, i32) {
    %c0_i32 = arith.constant 0 : i32
    %c0_i32_0 = arith.constant 0 : i32
    %c0_i32_1 = arith.constant 0 : i32
    return %c0_i32, %c0_i32_0 : i32, i32
  }
  func.func @transform_4(%arg0: i32) -> (i32, i32) {
    %c0_i32 = arith.constant 0 : i32
    %c0_i32_0 = arith.constant 0 : i32
    %c0_i32_1 = arith.constant 0 : i32
    return %c0_i32, %c0_i32_0 : i32, i32
  }
  func.func @transform_5(%arg0: i32) -> (i32, i32) {
    %c0_i32 = arith.constant 0 : i32
    %c0_i32_0 = arith.constant 0 : i32
    %c0_i32_1 = arith.constant 0 : i32
    return %c0_i32, %c0_i32_0 : i32, i32
  }
  func.func @transform_6(%arg0: i32) -> (i32, i32) {
    %c0_i32 = arith.constant 0 : i32
    %c0_i32_0 = arith.constant 0 : i32
    %c0_i32_1 = arith.constant 0 : i32
    return %c0_i32, %c0_i32_0 : i32, i32
  }
  func.func @transform_7(%arg0: i32) -> (i32, i32) {
    %c0_i32 = arith.constant 0 : i32
    %c0_i32_0 = arith.constant 0 : i32
    %c0_i32_1 = arith.constant 0 : i32
    return %c0_i32, %c0_i32_0 : i32, i32
  }
  func.func @transform_8(%arg0: i32) -> (i32, i32) {
    %c0_i32 = arith.constant 0 : i32
    %c0_i32_0 = arith.constant 0 : i32
    %c0_i32_1 = arith.constant 0 : i32
    return %c0_i32, %c0_i32_0 : i32, i32
  }
  func.func @transform_9(%arg0: i32) -> (i32, i32) {
    %c0_i32 = arith.constant 0 : i32
    %c0_i32_0 = arith.constant 0 : i32
    return %arg0, %c0_i32 : i32, i32
  }
}

</mosaic_0001>

<llo_original>
// kernel: tpu_custom_call.1
$region0: #{tpu_custom_call.1}
  #allocation0 [shape = 'u32[]', space=smem, size = 0x4, offset = 0x4, fixed_abs, tag = 'smem constant byte address 0x4 - core index']
  #allocation1 [shape = 'u32[72,128]{1,0:T(1,128)}', space=vmem, size = 0x9000, scoped, tag = 'internal scratch']
  #allocation2 [shape = 'f32[1,1]{1,0:T(1,128)S(1)}', space=vmem, size = 0x200, scoped, tag = 'scoped memory for tpu_custom_call.1']
  %s0 = inlined_call_operand.vmem [shape: bf16[8,32], index: 0, kind: input, shape index: {}]
  %s1 = inlined_call_operand.vmem [shape: bf16[32,32], index: 1, kind: input, shape index: {}]
  %s2 = inlined_call_operand.vmem [shape: f32[1,32], index: 2, kind: input, shape index: {}]
  %s3 = inlined_call_operand.vmem [shape: bf16[32,16], index: 3, kind: input, shape index: {}]
  %s4 = inlined_call_operand.vmem [shape: f32[1,16], index: 4, kind: input, shape index: {}]
  %s5 = inlined_call_operand.vmem [shape: bf16[16,8], index: 5, kind: input, shape index: {}]
  %s6 = inlined_call_operand.vmem [shape: f32[1,8], index: 6, kind: input, shape index: {}]
  %s7 = inlined_call_operand.vmem [shape: bf16[8,1], index: 7, kind: input, shape index: {}]
  %s8 = inlined_call_operand.<no memory space> [shape: f32[1,1], index: 8, kind: input, shape index: {}]
  %s9 = inlined_call_operand.vmem [shape: f32[8,1], index: 9, kind: output, shape index: {}]
  %s10 = sld [smem:[#allocation0]]
  $region46: #{tpu_custom_call.1} parent=0
    _
  %s12 = ssub.s32 1, %s10
  %s13 = scalar_select 0, %s12, %s10
  %v14 = vstv %s8
  %15 = vst [vmem:[#allocation2] sm:$0x1] %v14
  // Predicated region
  $region2: #{tpu_custom_call.1} parent=0 // pred_check
    _
  $region3: #{tpu_custom_call.1} parent=0 // pred_check_branch
    %17 = sbr.rel (0) target = $region5
  $region4: #{tpu_custom_call.1} parent=0 // pred_region
    _
  $region5: #{tpu_custom_call.1} parent=0 // pred_fallthru
    _
  // Predicated region
  $region6: #{tpu_custom_call.1} parent=0 // pred_check
    _
  $region7: #{tpu_custom_call.1} parent=0 // pred_check_branch
    %19 = sbr.rel (0) target = $region9
  $region8: #{tpu_custom_call.1} parent=0 // pred_region
    _
  $region9: #{tpu_custom_call.1} parent=0 // pred_fallthru
    _
  // Predicated region
  $region10: #{tpu_custom_call.1} parent=0 // pred_check
    _
  $region11: #{tpu_custom_call.1} parent=0 // pred_check_branch
    %21 = sbr.rel (0) target = $region13
  $region12: #{tpu_custom_call.1} parent=0 // pred_region
    _
  $region13: #{tpu_custom_call.1} parent=0 // pred_fallthru
    _
  // Predicated region
  $region14: #{tpu_custom_call.1} parent=0 // pred_check
    _
  $region15: #{tpu_custom_call.1} parent=0 // pred_check_branch
    %23 = sbr.rel (0) target = $region17
  $region16: #{tpu_custom_call.1} parent=0 // pred_region
    _
  $region17: #{tpu_custom_call.1} parent=0 // pred_fallthru
    _
  // Predicated region
  $region18: #{tpu_custom_call.1} parent=0 // pred_check
    _
  $region19: #{tpu_custom_call.1} parent=0 // pred_check_branch
    %25 = sbr.rel (0) target = $region21
  $region20: #{tpu_custom_call.1} parent=0 // pred_region
    _
  $region21: #{tpu_custom_call.1} parent=0 // pred_fallthru
    _
  // Predicated region
  $region22: #{tpu_custom_call.1} parent=0 // pred_check
    _
  $region23: #{tpu_custom_call.1} parent=0 // pred_check_branch
    %27 = sbr.rel (0) target = $region25
  $region24: #{tpu_custom_call.1} parent=0 // pred_region
    _
  $region25: #{tpu_custom_call.1} parent=0 // pred_fallthru
    _
  // Predicated region
  $region26: #{tpu_custom_call.1} parent=0 // pred_check
    _
  $region27: #{tpu_custom_call.1} parent=0 // pred_check_branch
    %29 = sbr.rel (0) target = $region29
  $region28: #{tpu_custom_call.1} parent=0 // pred_region
    _
  $region29: #{tpu_custom_call.1} parent=0 // pred_fallthru
    _
  // Predicated region
  $region30: #{tpu_custom_call.1} parent=0 // pred_check
    _
  $region31: #{tpu_custom_call.1} parent=0 // pred_check_branch
    %31 = sbr.rel (0) target = $region33
  $region32: #{tpu_custom_call.1} parent=0 // pred_region
    _
  $region33: #{tpu_custom_call.1} parent=0 // pred_fallthru
    _
  // Predicated region
  $region34: #{tpu_custom_call.1} parent=0 // pred_check
    _
  $region35: #{tpu_custom_call.1} parent=0 // pred_check_branch
    %33 = sbr.rel (0) target = $region37
  $region36: #{tpu_custom_call.1} parent=0 // pred_region
    _
  $region37: #{tpu_custom_call.1} parent=0 // pred_fallthru
    _
  %v35 = vld [vmem:[%s0] sm:$0xf]
  %v36 = vld [vmem:[%s1] sm:$0xf]
  %v37 = vld [vmem:[%s1 + $0x4] sm:$0xf]
  %v38 = vld [vmem:[%s1 + $0x8] sm:$0xf]
  %v39 = vld [vmem:[%s1 + $0xc] sm:$0xf]
  %v40 = vld [vmem:[%s2] sm:$0x1]
  %v42 = vperm.slane %v40, 0
  %v48 = vunpack.c.l.b16 %v36
  %v49 = vunpack.c.l.b16 %v37
  %v50 = vunpack.c.l.b16 %v38
  %v51 = vunpack.c.l.b16 %v39
  %v52 = vpack.c.b16 %v49, %v48
  %v53 = vpack.c.b16 %v51, %v50
  %vm56 = vcmask 261120
  %v58 = vsel %vm56, %v35, 0
  %60 = vmatpush.bf16.msra.mxu0 0
  %61 = vmatpush.bf16.msra.mxu0 0
  %62 = vmatpush.bf16.msra.mxu0 0
  %63 = vmatpush.bf16.msra.mxu0 0
  %64 = vmatpush.bf16.msra.mxu0 0
  %65 = vmatpush.bf16.msra.mxu0 0
  %66 = vmatpush.bf16.msra.mxu0 %v53
  %67 = vmatpush.bf16.msra.mxu0 %v52
  %68 = vmatmul.bf16.gmra.mxu0 %v58
  %v69 = vpop.f32.mrf.mxu0
  %v70 = vadd.f32 %v42, %v69
  %v71 = vpop.f32.mrf.mxu0
  %72 = vdwg.mxu0
  %vm73 = vcmp.ge.f32.partialorder %v70, 0.0
  %v74 = vmul.f32 %v70, 0.2
  %v75 = vsel %vm73, %v70, %v74
  %v76 = vpack.c.bf16 %v75, %v75
  %v77 = vld [vmem:[%s3] sm:$0xf]
  %v78 = vld [vmem:[%s3 + $0x4] sm:$0xf]
  %v79 = vld [vmem:[%s3 + $0x8] sm:$0xf]
  %v80 = vld [vmem:[%s3 + $0xc] sm:$0xf]
  %v81 = vld [vmem:[%s4] sm:$0x1]
  %v83 = vperm.slane %v81, 0
  %v89 = vunpack.c.l.b16 %v77
  %v90 = vunpack.c.l.b16 %v78
  %v91 = vunpack.c.l.b16 %v79
  %v92 = vunpack.c.l.b16 %v80
  %v93 = vpack.c.b16 %v90, %v89
  %v94 = vpack.c.b16 %v92, %v91
  %v98 = vsel %vm56, %v76, 0
  %100 = vmatpush.bf16.msra.mxu0 0
  %101 = vmatpush.bf16.msra.mxu0 0
  %102 = vmatpush.bf16.msra.mxu0 0
  %103 = vmatpush.bf16.msra.mxu0 0
  %104 = vmatpush.bf16.msra.mxu0 0
  %105 = vmatpush.bf16.msra.mxu0 0
  %106 = vmatpush.bf16.msra.mxu0 %v94
  %107 = vmatpush.bf16.msra.mxu0 %v93
  %108 = vmatmul.bf16.gmra.mxu0 %v98
  %v109 = vpop.f32.mrf.mxu0
  %v110 = vadd.f32 %v83, %v109
  %v111 = vpop.f32.mrf.mxu0
  %112 = vdwg.mxu0
  %vm113 = vcmp.ge.f32.partialorder %v110, 0.0
  %v114 = vmul.f32 %v110, 0.2
  %v115 = vsel %vm113, %v110, %v114
  %v116 = vpack.c.bf16 %v115, %v115
  %v117 = vld [vmem:[%s5] sm:$0xf]
  %v118 = vld [vmem:[%s5 + $0x4] sm:$0xf]
  %v119 = vld [vmem:[%s6] sm:$0x1]
  %v121 = vperm.slane %v119, 0
  %v125 = vunpack.c.l.b16 %v117
  %v126 = vunpack.c.l.b16 %v118
  %v127 = vpack.c.b16 %v126, %v125
  %vm129 = vcmask 130048
  %v131 = vsel %vm129, %v116, 0
  %133 = vmatpush.bf16.msra.mxu0 0
  %134 = vmatpush.bf16.msra.mxu0 0
  %135 = vmatpush.bf16.msra.mxu0 0
  %136 = vmatpush.bf16.msra.mxu0 0
  %137 = vmatpush.bf16.msra.mxu0 0
  %138 = vmatpush.bf16.msra.mxu0 0
  %139 = vmatpush.bf16.msra.mxu0 0
  %140 = vmatpush.bf16.msra.mxu0 %v127
  %141 = vmatmul.bf16.gmra.mxu0 %v131
  %v142 = vpop.f32.mrf.mxu0
  %v143 = vadd.f32 %v121, %v142
  %v144 = vpop.f32.mrf.mxu0
  %145 = vdwg.mxu0
  %vm146 = vcmp.ge.f32.partialorder %v143, 0.0
  %v147 = vmul.f32 %v143, 0.2
  %v148 = vsel %vm146, %v143, %v147
  %v149 = vpack.c.bf16 %v148, %v148
  %v150 = vld [vmem:[%s7] sm:$0xf]
  %v151 = vld [vmem:[#allocation2] sm:$0x1]
  %v153 = vperm.slane %v151, 0
  %vm155 = vcmask 64512
  %v157 = vsel %vm155, %v149, 0
  %vm159 = vcmask 1043456
  %v161 = vsel %vm159, %v150, 0
  %163 = vmatpush.bf16.msra.mxu0 0
  %164 = vmatpush.bf16.msra.mxu0 0
  %165 = vmatpush.bf16.msra.mxu0 0
  %166 = vmatpush.bf16.msra.mxu0 0
  %167 = vmatpush.bf16.msra.mxu0 0
  %168 = vmatpush.bf16.msra.mxu0 0
  %169 = vmatpush.bf16.msra.mxu0 0
  %170 = vmatpush.bf16.msra.mxu0 %v161
  %171 = vmatmul.bf16.gmra.mxu0 %v157
  %v172 = vpop.f32.mrf.mxu0
  %v173 = vadd.f32 %v153, %v172
  %v174 = vpop.f32.mrf.mxu0
  %175 = vdwg.mxu0
  %v176 = vtanh.pop %v173
  %vm177 = vcmask 7168
  %178 = vst.msk [vmem:[%s9] sm:$0xff] %vm177, %v176
  // Predicated region
  $region38: #{tpu_custom_call.1} parent=0 // pred_check
    _
  $region39: #{tpu_custom_call.1} parent=0 // pred_check_branch
    %180 = sbr.rel (0) target = $region41
  $region40: #{tpu_custom_call.1} parent=0 // pred_region
    _
  $region41: #{tpu_custom_call.1} parent=0 // pred_fallthru
    _
  // Predicated region
  $region42: #{tpu_custom_call.1} parent=0 // pred_check
    _
  $region43: #{tpu_custom_call.1} parent=0 // pred_check_branch
    %182 = sbr.rel (0) target = $region45
  $region44: #{tpu_custom_call.1} parent=0 // pred_region
    _
  $region45: #{tpu_custom_call.1} parent=0 // pred_fallthru
    _

</llo_original>
